<compile_context>
chip_gen: v6e
topology: v6e:2x2x1
jax: 0.10.0
libtpu: 0.0.40
codegen_flags: <defaults>
</compile_context>

<pallas_src>
import numpy as np

import jax
import jax.numpy as jnp
from jax import lax
from jax.experimental import pallas as pl
from jax.experimental.pallas import tpu as pltpu


def _round_up(x, m):
    return ((x + m - 1) // m) * m


def fold_bn(gamma, beta, mean, var, eps=1e-5):
    scale = gamma / jnp.sqrt(var + eps)
    shift = beta - mean * scale
    return scale, shift


def _pad_shift(sh, cpad):
    return jnp.pad(sh, (0, cpad - sh.shape[0])).reshape(-1, 1).astype(jnp.float32)


def _pack_3x3(w_oihw, cin_pad, cout_pad):
    """(Cout, Cin, 3, 3) folded weight -> (Cout_pad, 9*Cin_pad).
    Column (dh*3+dw)*cin_pad + c holds W[o, c, dh, dw] (tap order dh, dw)."""
    cout, cin, kh, kw = w_oihw.shape
    w = jnp.transpose(w_oihw, (0, 2, 3, 1))                  # (O, KH, KW, I)
    w = jnp.pad(w, ((0, cout_pad - cout), (0, 0), (0, 0), (0, cin_pad - cin)))
    return w.reshape(cout_pad, kh * kw * cin_pad)


def _pick_imgs_per_step(n, seg_out, img_in_bytes):
    """>=2 grid steps when possible (v7x dual-TC), lane-dense output blocks,
    and a conservative per-step VMEM cap (fits v7x's smaller VMEM easily)."""
    best = 1
    if n >= 2:
        lane_target = max(1, 1024 // seg_out)
        for d in range(1, n // 2 + 1):
            if n % d == 0 and d <= lane_target and d * img_in_bytes <= (4 << 20):
                best = d
    return best


# ----------------------------------------------------------------------------
# Fused kernel: conv1(3x3,s)+BN+ReLU -> conv2(3x3,1)+BN (+residual) (+ReLU)
# ----------------------------------------------------------------------------
def _make_fused_kernel(*, imgs, cin_pad, cout_pad, rows1, offs1, offs2,
                       seg1_in, seg1_out, seg2_out, y_off,
                       res_mode, res_row, res_off, apply_relu):
    n_extra = 2 if res_mode == "conv" else 0

    def kernel(*refs):
        x_ref, w1_ref, s1_ref, m1_ref, w2_ref, s2_ref = refs[:6]
        if res_mode == "conv":
            wd_ref, sd_ref = refs[6], refs[7]
        o_ref = refs[6 + n_extra]
        y1_ref = refs[7 + n_extra]

        # The y1 scratch doubles as conv2's zero-padded input grid: the
        # padding-ring lanes must read as 0, so clear it once per grid step.
        y1_ref[...] = jnp.zeros_like(y1_ref)

        # Hoist all loop-invariant loads out of the per-image loop.
        w1 = w1_ref[...]
        s1 = s1_ref[...]
        m1 = m1_ref[...]
        w2 = w2_ref[...]
        s2 = s2_ref[...]
        if res_mode == "conv":
            wd = wd_ref[...]
            sd = sd_ref[...]

        for i in range(imgs):                      # static unroll over images
            xb = i * seg1_in

            # -- conv1: ONE MXU dot, K = 9*cin_pad (taps concatenated on
            #    the sublane axis from static lane-shifted slices) ----------
            taps1 = [x_ref[r:r + cin_pad, xb + o:xb + o + seg1_out]
                     for r, o in zip(rows1, offs1)]
            a1 = jnp.dot(w1, jnp.concatenate(taps1, axis=0),
                         preferred_element_type=jnp.float32)
            # folded-BN shift + ReLU, then zero the lanes that fall onto
            # conv2's padding ring (static mask).
            a1 = jnp.maximum(a1 + s1, 0.0) * m1
            # conv1's flattened output layout IS conv2's padded grid layout
            # shifted by wg+1 lanes: write y1 once, directly in place.
            y1_ref[:, y_off:y_off + seg1_out] = a1.astype(y1_ref.dtype)

            # -- conv2: ONE MXU dot, K = 9*cout_pad --------------------------
            taps2 = [y1_ref[:, o:o + seg2_out] for o in offs2]
            a2 = jnp.dot(w2, jnp.concatenate(taps2, axis=0),
                         preferred_element_type=jnp.float32) + s2

            # -- residual, read straight from the conv1 input block ---------
            if res_mode == "conv":                 # fused 1x1 downsample + BN
                xd = x_ref[res_row:res_row + cin_pad,
                           xb + res_off:xb + res_off + seg2_out]
                a2 = a2 + jnp.dot(wd, xd, preferred_element_type=jnp.float32)
                a2 = a2 + sd
            elif res_mode == "add":                # identity residual (bf16)
                xr = x_ref[0:cout_pad, xb + res_off:xb + res_off + seg2_out]
                a2 = a2 + xr.astype(jnp.float32)

            if apply_relu:
                a2 = jnp.maximum(a2, 0.0)
            o_ref[:, i * seg2_out:(i + 1) * seg2_out] = a2.astype(o_ref.dtype)

    return kernel


# ----------------------------------------------------------------------------
# BasicBlock with deterministic synthetic parameters (inference BN folded)
# ----------------------------------------------------------------------------
class BasicBlockPallas:
    def __init__(self, inplanes, out_planes, stride=2, downsample=1, Res=0,
                 islast=False, key=None):
        if key is None:
            key = jax.random.PRNGKey(0)
        self.inplanes = inplanes
        self.out_planes = out_planes
        self.stride = stride
        self.downsample = downsample
        self.Res = Res
        self.islast = islast
        # bf16 packs 16 rows per sublane tile -> pad channels to 16 so every
        # tap slice / sublane concat inside the kernel is tile-aligned.
        self.cin_pad = _round_up(inplanes, 16)
        self.cout_pad = _round_up(out_planes, 16)

        ks = jax.random.split(key, 12)

        def conv_w(k, cout, cin, kh, kw):
            fan_in = cin * kh * kw
            return jax.random.normal(k, (cout, cin, kh, kw),
                                     jnp.float32) / jnp.sqrt(fan_in)

        def bn_params(kg, kb, km, kv, c):
            gamma = 1.0 + 0.1 * jax.random.normal(kg, (c,), jnp.float32)
            beta = 0.1 * jax.random.normal(kb, (c,), jnp.float32)
            mean = 0.1 * jax.random.normal(km, (c,), jnp.float32)
            var = 1.0 + 0.1 * jax.random.uniform(kv, (c,), jnp.float32)
            return gamma, beta, mean, var

        w1 = conv_w(ks[0], out_planes, inplanes, 3, 3)
        bn1 = bn_params(ks[1], ks[2], ks[3], ks[4], out_planes)
        w2 = conv_w(ks[5], out_planes, out_planes, 3, 3)
        bn2 = bn_params(ks[6], ks[7], ks[8], ks[9], out_planes)

        # Fold inference BatchNorm into the conv weights ONCE (host side):
        #   conv(x) -> conv(x, W*scale) + shift
        s1, sh1 = fold_bn(*bn1)
        s2, sh2 = fold_bn(*bn2)
        self.w1_f = (w1 * s1[:, None, None, None]).astype(jnp.bfloat16)
        self.w2_f = (w2 * s2[:, None, None, None]).astype(jnp.bfloat16)
        self.shift1 = _pad_shift(sh1, self.cout_pad)
        self.shift2 = _pad_shift(sh2, self.cout_pad)
        # Pre-packed single-dot weights: (Cout_pad, 9*Cin_pad).
        self.w1_packed = _pack_3x3(self.w1_f, self.cin_pad, self.cout_pad)
        self.w2_packed = _pack_3x3(self.w2_f, self.cout_pad, self.cout_pad)

        if downsample == 1:
            wd = conv_w(ks[10], out_planes, inplanes, 1, 1)
            bnd = bn_params(ks[11], ks[2], ks[7], ks[4], out_planes)
            sd, shd = fold_bn(*bnd)
            self.wd_f = (wd * sd[:, None, None, None]).astype(jnp.bfloat16)
            self.shiftd = _pad_shift(shd, self.cout_pad)
            self.wd_mat = jnp.pad(self.wd_f[:, :, 0, 0],
                                  ((0, self.cout_pad - out_planes),
                                   (0, self.cin_pad - inplanes)))

    def __call__(self, x_nchw):
        n, cin, h, w = x_nchw.shape
        assert cin == self.inplanes
        s = self.stride
        cp_in, cp_out = self.cin_pad, self.cout_pad
        ho = (h - 1) // s + 1
        wo = (w - 1) // s + 1
        wg = wo + 2                    # shared grid width: conv1-out == conv2-in
        hg2 = ho + 2

        if s == 1:
            hg1 = h + 2
            rows1 = (0,) * 9
            offs1 = tuple(dh * wg + dw for dh in range(3) for dw in range(3))
            max_off1 = 2 * wg + 2
            x_rows = cp_in
        elif s == 2:                   # space-to-depth -> stride-1 taps
            hg1 = ho + 1
            rows1 = tuple(((dh % 2) * 2 + (dw % 2)) * cp_in
                          for dh in range(3) for dw in range(3))
            offs1 = tuple((dh // 2) * wg + (dw // 2)
                          for dh in range(3) for dw in range(3))
            max_off1 = wg + 1
            x_rows = 4 * cp_in
        else:
            raise NotImplementedError("stride must be 1 or 2")
        offs2 = tuple(dh * wg + dw for dh in range(3) for dw in range(3))

        last_valid = (ho - 1) * wg + wo              # one past last valid lane
        seg_out = _round_up(last_valid, 128)         # lane-dense output blocks
        assert seg_out >= last_valid                 # never clip valid lanes
        seg1_out = seg_out
        seg1_in = _round_up(max(hg1 * wg, seg1_out + max_off1), 128)
        seg2_in = _round_up(max(hg2 * wg, seg_out + 2 * wg + 2,
                                wg + 1 + seg1_out), 128)

        # Residual configuration: both variants are read from the conv1
        # input block inside the kernel (no separate residual operand).
        res_mode, res_row, res_off = None, 0, 0
        if self.Res == 1:
            if self.downsample == 1:
                res_mode = "conv"
                res_row, res_off = (3 * cp_in, 0) if s == 2 else (0, wg + 1)
            else:
                assert s == 1 and self.inplanes == self.out_planes, (
                    "identity residual needs stride=1 and inplanes==out_planes")
                res_mode = "add"
                res_row, res_off = 0, wg + 1

        # ---- host-side layout: pad + (phase split) + flatten onto lanes ----
        xb16 = x_nchw.astype(jnp.bfloat16)
        if s == 1:
            xp = jnp.pad(xb16, ((0, 0), (0, 0),
                                (1, hg1 - h - 1), (1, wg - w - 1)))
            xt = jnp.transpose(xp, (1, 0, 2, 3))
            xt = jnp.pad(xt, ((0, cp_in - cin), (0, 0), (0, 0), (0, 0)))
            xt = xt.reshape(cp_in, n, hg1 * wg)
        else:
            hp, wp = 2 * hg1, 2 * wg
            xp = jnp.pad(xb16, ((0, 0), (0, 0),
                                (1, hp - h - 1), (1, wp - w - 1)))
            xs = xp.reshape(n, cin, hg1, 2, wg, 2)
            xs = jnp.transpose(xs, (3, 5, 1, 0, 2, 4))  # (ph, pw, C, N, hg, wg)
            xs = jnp.pad(xs, ((0, 0), (0, 0), (0, cp_in - cin),
                              (0, 0), (0, 0), (0, 0)))
            xt = xs.reshape(4 * cp_in, n, hg1 * wg)
        xt = jnp.pad(xt, ((0, 0), (0, 0), (0, seg1_in - hg1 * wg)))
        x_flat = xt.reshape(x_rows, n * seg1_in)

        # Static ring mask for conv1's garbage lanes (they land exactly on
        # conv2's zero-padding ring).  Built host-side: no in-kernel int mod.
        lanes = np.arange(seg1_out)
        mask1 = jnp.asarray(((lanes % wg < wo) & (lanes < ho * wg))
                            .astype(np.float32).reshape(1, seg1_out))

        imgs = _pick_imgs_per_step(n, seg_out, x_rows * seg1_in * 2)
        grid = (n // imgs,)

        args = [x_flat, self.w1_packed, self.shift1, mask1,
                self.w2_packed, self.shift2]
        in_specs = [
            pl.BlockSpec((x_rows, imgs * seg1_in), lambda i: (0, i)),
            pl.BlockSpec(self.w1_packed.shape, lambda i: (0, 0)),
            pl.BlockSpec(self.shift1.shape, lambda i: (0, 0)),
            pl.BlockSpec((1, seg1_out), lambda i: (0, 0)),
            pl.BlockSpec(self.w2_packed.shape, lambda i: (0, 0)),
            pl.BlockSpec(self.shift2.shape, lambda i: (0, 0)),
        ]
        if res_mode == "conv":
            args += [self.wd_mat, self.shiftd]
            in_specs += [pl.BlockSpec(self.wd_mat.shape, lambda i: (0, 0)),
                         pl.BlockSpec(self.shiftd.shape, lambda i: (0, 0))]

        kernel = _make_fused_kernel(
            imgs=imgs, cin_pad=cp_in, cout_pad=cp_out, rows1=rows1,
            offs1=offs1, offs2=offs2, seg1_in=seg1_in, seg1_out=seg1_out,
            seg2_out=seg_out, y_off=wg + 1, res_mode=res_mode,
            res_row=res_row, res_off=res_off, apply_relu=not self.islast)

        out_flat = pl.pallas_call(
            kernel,
            out_shape=jax.ShapeDtypeStruct((cp_out, n * seg_out), jnp.float32),
            grid=grid,
            in_specs=in_specs,
            out_specs=pl.BlockSpec((cp_out, imgs * seg_out), lambda i: (0, i)),
            scratch_shapes=[pltpu.VMEM((cp_out, seg2_in), jnp.bfloat16)],
            compiler_params=pltpu.CompilerParams(
                dimension_semantics=("parallel",)),
        )(*args)

        # ---- extract the valid (ho, wo) region from the lane grid ----------
        hg_out = -(-seg_out // wg)
        og = out_flat.reshape(cp_out, n, seg_out)
        og = jnp.pad(og, ((0, 0), (0, 0), (0, hg_out * wg - seg_out)))
        og = og.reshape(cp_out, n, hg_out, wg)[:self.out_planes, :, :ho, :wo]
        return jnp.transpose(og, (1, 0, 2, 3))       # back to NCHW


# ----------------------------------------------------------------------------
# Pure-JAX reference (lax.conv), numerically matched to the kernel's precision
# choices (same folded bf16 weights, bf16 activations between stages, bf16
# residual operand, f32 accumulation / epilogue).
# ----------------------------------------------------------------------------
def reference_forward(block, x_nchw):
    dn = ("NCHW", "OIHW", "NCHW")

    def conv(x, wgt, stride, pad):
        return lax.conv_general_dilated(
            x.astype(jnp.bfloat16), wgt, (stride, stride),
            [(pad, pad), (pad, pad)], dimension_numbers=dn,
            preferred_element_type=jnp.float32)

    co = block.out_planes
    sh1 = block.shift1[:co].reshape(1, co, 1, 1)
    sh2 = block.shift2[:co].reshape(1, co, 1, 1)
    y1 = jax.nn.relu(conv(x_nchw, block.w1_f, block.stride, 1) + sh1)
    y1 = y1.astype(jnp.bfloat16)                 # matches kernel y1 dtype
    out = conv(y1, block.w2_f, 1, 1) + sh2
    if block.Res == 1:
        if block.downsample == 1:
            shd = block.shiftd[:co].reshape(1, co, 1, 1)
            out = out + conv(x_nchw, block.wd_f, block.stride, 0) + shd
        else:
            out = out + x_nchw.astype(jnp.bfloat16).astype(jnp.float32)
    return out if block.islast else jax.nn.relu(out)


if __name__ == "__main__":
    key = jax.random.PRNGKey(0)
    kx1, kp1, kx2, kp2 = jax.random.split(key, 4)

    # --- Config 1: module-default shape -- stride 2, fused downsample res ----
    N, C, H, W = 2, 4, 16, 16
    x1 = jax.random.normal(kx1, (N, C, H, W), jnp.float32)
    blk1 = BasicBlockPallas(inplanes=4, out_planes=8, stride=2,
                            downsample=1, Res=1, islast=False, key=kp1)
    out1 = jax.block_until_ready(jax.jit(blk1.__call__)(x1))
    ref1 = jax.block_until_ready(reference_forward(blk1, x1))
    assert out1.shape == (N, 8, H // 2, W // 2), out1.shape
    err1 = float(jnp.max(jnp.abs(out1 - ref1)))
    assert jnp.allclose(out1, ref1, rtol=1e-2, atol=1e-2), err1

    # --- Config 2: stride 1, identity residual -------------------------------
    x2 = jax.random.normal(kx2, (2, 8, 16, 16), jnp.float32)
    blk2 = BasicBlockPallas(inplanes=8, out_planes=8, stride=1,
                            downsample=0, Res=1, islast=False, key=kp2)
    out2 = jax.block_until_ready(jax.jit(blk2.__call__)(x2))
    ref2 = jax.block_until_ready(reference_forward(blk2, x2))
    assert out2.shape == (2, 8, 16, 16), out2.shape
    err2 = float(jnp.max(jnp.abs(out2 - ref2)))
    assert jnp.allclose(out2, ref2, rtol=1e-2, atol=1e-2), err2

    print("KERNEL_OK")
</pallas_src>

<mosaic_0001>
module attributes {stable_mosaic.version = 11 : i64} {
  func.func @kernel(%arg0: i32, %arg1: memref<64x256xbf16, #tpu.memory_space<vmem>>, %arg2: memref<16x144xbf16, #tpu.memory_space<vmem>>, %arg3: memref<16x1xf32, #tpu.memory_space<vmem>>, %arg4: memref<1x128xf32, #tpu.memory_space<vmem>>, %arg5: memref<16x144xbf16, #tpu.memory_space<vmem>>, %arg6: memref<16x1xf32, #tpu.memory_space<vmem>>, %arg7: memref<16x16xbf16, #tpu.memory_space<vmem>>, %arg8: memref<16x1xf32, #tpu.memory_space<vmem>>, %arg9: memref<16x128xf32, #tpu.memory_space<vmem>>, %arg10: memref<16x256xbf16, #tpu.memory_space<vmem>>) attributes {dimension_semantics = [#tpu.dimension_semantics<parallel>], iteration_bounds = array<i64: 2>, scalar_prefetch = 0 : i64, scratch_operands = 1 : i64, tpu.core_type = #tpu.core_type<tc>, window_params = [{transform_indices = @transform_0, window_bounds = array<i64: 64, 256>}, {pipeline_mode = #tpu.pipeline_mode<synchronous>, transform_indices = @transform_1, window_bounds = array<i64: 16, 144>}, {pipeline_mode = #tpu.pipeline_mode<synchronous>, transform_indices = @transform_2, window_bounds = array<i64: 16, 1>}, {pipeline_mode = #tpu.pipeline_mode<synchronous>, transform_indices = @transform_3, window_bounds = array<i64: 1, 128>}, {pipeline_mode = #tpu.pipeline_mode<synchronous>, transform_indices = @transform_4, window_bounds = array<i64: 16, 144>}, {pipeline_mode = #tpu.pipeline_mode<synchronous>, transform_indices = @transform_5, window_bounds = array<i64: 16, 1>}, {pipeline_mode = #tpu.pipeline_mode<synchronous>, transform_indices = @transform_6, window_bounds = array<i64: 16, 16>}, {pipeline_mode = #tpu.pipeline_mode<synchronous>, transform_indices = @transform_7, window_bounds = array<i64: 16, 1>}, {transform_indices = @transform_8, window_bounds = array<i64: 16, 128>}]} {
    %cst = arith.constant 0.000000e+00 : bf16
    %0 = vector.broadcast %cst : bf16 to vector<16x256xbf16>
    %c0 = arith.constant 0 : index
    %c0_0 = arith.constant 0 : index
    %1 = vector.load %arg10[%c0, %c0_0] : memref<16x256xbf16, #tpu.memory_space<vmem>>, vector<16x256xbf16>
    tpu.vector_store %arg10[%c0, %c0_0], %0 {strides = array<i32>} : memref<16x256xbf16, #tpu.memory_space<vmem>>, vector<16x256xbf16>,
    %c0_1 = arith.constant 0 : index
    %c0_2 = arith.constant 0 : index
    %2 = vector.load %arg2[%c0_1, %c0_2] : memref<16x144xbf16, #tpu.memory_space<vmem>>, vector<16x144xbf16>
    %c0_3 = arith.constant 0 : index
    %c0_4 = arith.constant 0 : index
    %3 = vector.load %arg3[%c0_3, %c0_4] : memref<16x1xf32, #tpu.memory_space<vmem>>, vector<16x1xf32>
    %c0_5 = arith.constant 0 : index
    %c0_6 = arith.constant 0 : index
    %4 = vector.load %arg4[%c0_5, %c0_6] : memref<1x128xf32, #tpu.memory_space<vmem>>, vector<1x128xf32>
    %c0_7 = arith.constant 0 : index
    %c0_8 = arith.constant 0 : index
    %5 = vector.load %arg5[%c0_7, %c0_8] : memref<16x144xbf16, #tpu.memory_space<vmem>>, vector<16x144xbf16>
    %c0_9 = arith.constant 0 : index
    %c0_10 = arith.constant 0 : index
    %6 = vector.load %arg6[%c0_9, %c0_10] : memref<16x1xf32, #tpu.memory_space<vmem>>, vector<16x1xf32>
    %c0_11 = arith.constant 0 : index
    %c0_12 = arith.constant 0 : index
    %7 = vector.load %arg7[%c0_11, %c0_12] : memref<16x16xbf16, #tpu.memory_space<vmem>>, vector<16x16xbf16>
    %c0_13 = arith.constant 0 : index
    %c0_14 = arith.constant 0 : index
    %8 = vector.load %arg8[%c0_13, %c0_14] : memref<16x1xf32, #tpu.memory_space<vmem>>, vector<16x1xf32>
    %c0_15 = arith.constant 0 : index
    %c0_16 = arith.constant 0 : index
    %9 = vector.load %arg1[%c0_15, %c0_16] : memref<64x256xbf16, #tpu.memory_space<vmem>>, vector<16x128xbf16>
    %c16 = arith.constant 16 : index
    %c0_17 = arith.constant 0 : index
    %10 = vector.load %arg1[%c16, %c0_17] : memref<64x256xbf16, #tpu.memory_space<vmem>>, vector<16x128xbf16>
    %c0_18 = arith.constant 0 : index
    %c1 = arith.constant 1 : index
    %11 = vector.load %arg1[%c0_18, %c1] : memref<64x256xbf16, #tpu.memory_space<vmem>>, vector<16x128xbf16>
    %c32 = arith.constant 32 : index
    %c0_19 = arith.constant 0 : index
    %12 = vector.load %arg1[%c32, %c0_19] : memref<64x256xbf16, #tpu.memory_space<vmem>>, vector<16x128xbf16>
    %c48 = arith.constant 48 : index
    %c0_20 = arith.constant 0 : index
    %13 = vector.load %arg1[%c48, %c0_20] : memref<64x256xbf16, #tpu.memory_space<vmem>>, vector<16x128xbf16>
    %c32_21 = arith.constant 32 : index
    %c1_22 = arith.constant 1 : index
    %14 = vector.load %arg1[%c32_21, %c1_22] : memref<64x256xbf16, #tpu.memory_space<vmem>>, vector<16x128xbf16>
    %c0_23 = arith.constant 0 : index
    %c10 = arith.constant 10 : index
    %15 = vector.load %arg1[%c0_23, %c10] : memref<64x256xbf16, #tpu.memory_space<vmem>>, vector<16x128xbf16>
    %c16_24 = arith.constant 16 : index
    %c10_25 = arith.constant 10 : index
    %16 = vector.load %arg1[%c16_24, %c10_25] : memref<64x256xbf16, #tpu.memory_space<vmem>>, vector<16x128xbf16>
    %c0_26 = arith.constant 0 : index
    %c11 = arith.constant 11 : index
    %17 = vector.load %arg1[%c0_26, %c11] : memref<64x256xbf16, #tpu.memory_space<vmem>>, vector<16x128xbf16>
    %18 = tpu.concatenate %9, %10, %11, %12, %13, %14, %15, %16, %17 in 0 : vector<16x128xbf16>, vector<16x128xbf16>, vector<16x128xbf16>, vector<16x128xbf16>, vector<16x128xbf16>, vector<16x128xbf16>, vector<16x128xbf16>, vector<16x128xbf16>, vector<16x128xbf16> -> vector<144x128xbf16>
    %cst_27 = arith.constant dense<0.000000e+00> : vector<16x128xf32>
    %19 = tpu.matmul %2, %18, %cst_27 {dimension_numbers = #tpu.dot_dimension_numbers<[1], [0], [0], [1], [0, 0, 1, 1], [], []>} : vector<16x144xbf16>, vector<144x128xbf16>, vector<16x128xf32> -> vector<16x128xf32>
    %20 = vector.broadcast %3 : vector<16x1xf32> to vector<16x128xf32>
    %21 = arith.addf %19, %20 : vector<16x128xf32>
    %cst_28 = arith.constant 0.000000e+00 : f32
    %22 = vector.broadcast %cst_28 : f32 to vector<16x128xf32>
    %23 = arith.maximumf %21, %22 : vector<16x128xf32>
    %24 = vector.broadcast %4 : vector<1x128xf32> to vector<16x128xf32>
    %25 = arith.mulf %23, %24 : vector<16x128xf32>
    %26 = arith.truncf %25 : vector<16x128xf32> to vector<16x128xbf16>
    %c0_29 = arith.constant 0 : index
    %c11_30 = arith.constant 11 : index
    %27 = vector.load %arg10[%c0_29, %c11_30] : memref<16x256xbf16, #tpu.memory_space<vmem>>, vector<16x128xbf16>
    tpu.vector_store %arg10[%c0_29, %c11_30], %26 {strides = array<i32>} : memref<16x256xbf16, #tpu.memory_space<vmem>>, vector<16x128xbf16>,
    %c0_31 = arith.constant 0 : index
    %c0_32 = arith.constant 0 : index
    %28 = vector.load %arg10[%c0_31, %c0_32] : memref<16x256xbf16, #tpu.memory_space<vmem>>, vector<16x128xbf16>
    %c0_33 = arith.constant 0 : index
    %c1_34 = arith.constant 1 : index
    %29 = vector.load %arg10[%c0_33, %c1_34] : memref<16x256xbf16, #tpu.memory_space<vmem>>, vector<16x128xbf16>
    %c0_35 = arith.constant 0 : index
    %c2 = arith.constant 2 : index
    %30 = vector.load %arg10[%c0_35, %c2] : memref<16x256xbf16, #tpu.memory_space<vmem>>, vector<16x128xbf16>
    %c0_36 = arith.constant 0 : index
    %c10_37 = arith.constant 10 : index
    %31 = vector.load %arg10[%c0_36, %c10_37] : memref<16x256xbf16, #tpu.memory_space<vmem>>, vector<16x128xbf16>
    %c0_38 = arith.constant 0 : index
    %c11_39 = arith.constant 11 : index
    %32 = vector.load %arg10[%c0_38, %c11_39] : memref<16x256xbf16, #tpu.memory_space<vmem>>, vector<16x128xbf16>
    %c0_40 = arith.constant 0 : index
    %c12 = arith.constant 12 : index
    %33 = vector.load %arg10[%c0_40, %c12] : memref<16x256xbf16, #tpu.memory_space<vmem>>, vector<16x128xbf16>
    %c0_41 = arith.constant 0 : index
    %c20 = arith.constant 20 : index
    %34 = vector.load %arg10[%c0_41, %c20] : memref<16x256xbf16, #tpu.memory_space<vmem>>, vector<16x128xbf16>
    %c0_42 = arith.constant 0 : index
    %c21 = arith.constant 21 : index
    %35 = vector.load %arg10[%c0_42, %c21] : memref<16x256xbf16, #tpu.memory_space<vmem>>, vector<16x128xbf16>
    %c0_43 = arith.constant 0 : index
    %c22 = arith.constant 22 : index
    %36 = vector.load %arg10[%c0_43, %c22] : memref<16x256xbf16, #tpu.memory_space<vmem>>, vector<16x128xbf16>
    %37 = tpu.concatenate %28, %29, %30, %31, %32, %33, %34, %35, %36 in 0 : vector<16x128xbf16>, vector<16x128xbf16>, vector<16x128xbf16>, vector<16x128xbf16>, vector<16x128xbf16>, vector<16x128xbf16>, vector<16x128xbf16>, vector<16x128xbf16>, vector<16x128xbf16> -> vector<144x128xbf16>
    %cst_44 = arith.constant dense<0.000000e+00> : vector<16x128xf32>
    %38 = tpu.matmul %5, %37, %cst_44 {dimension_numbers = #tpu.dot_dimension_numbers<[1], [0], [0], [1], [0, 0, 1, 1], [], []>} : vector<16x144xbf16>, vector<144x128xbf16>, vector<16x128xf32> -> vector<16x128xf32>
    %39 = vector.broadcast %6 : vector<16x1xf32> to vector<16x128xf32>
    %40 = arith.addf %38, %39 : vector<16x128xf32>
    %c48_45 = arith.constant 48 : index
    %c0_46 = arith.constant 0 : index
    %41 = vector.load %arg1[%c48_45, %c0_46] : memref<64x256xbf16, #tpu.memory_space<vmem>>, vector<16x128xbf16>
    %cst_47 = arith.constant dense<0.000000e+00> : vector<16x128xf32>
    %42 = tpu.matmul %7, %41, %cst_47 {dimension_numbers = #tpu.dot_dimension_numbers<[1], [0], [0], [1], [0, 0, 1, 1], [], []>} : vector<16x16xbf16>, vector<16x128xbf16>, vector<16x128xf32> -> vector<16x128xf32>
    %43 = arith.addf %40, %42 : vector<16x128xf32>
    %44 = vector.broadcast %8 : vector<16x1xf32> to vector<16x128xf32>
    %45 = arith.addf %43, %44 : vector<16x128xf32>
    %cst_48 = arith.constant 0.000000e+00 : f32
    %46 = vector.broadcast %cst_48 : f32 to vector<16x128xf32>
    %47 = arith.maximumf %45, %46 : vector<16x128xf32>
    %c0_49 = arith.constant 0 : index
    %c0_50 = arith.constant 0 : index
    %48 = vector.load %arg9[%c0_49, %c0_50] : memref<16x128xf32, #tpu.memory_space<vmem>>, vector<16x128xf32>
    tpu.vector_store %arg9[%c0_49, %c0_50], %47 {strides = array<i32>} : memref<16x128xf32, #tpu.memory_space<vmem>>, vector<16x128xf32>,
    return
  }
  func.func @transform_0(%arg0: i32) -> (i32, i32) {
    %c0_i32 = arith.constant 0 : i32
    %c0_i32_0 = arith.constant 0 : i32
    return %c0_i32, %arg0 : i32, i32
  }
  func.func @transform_1(%arg0: i32) -> (i32, i32) {
    %c0_i32 = arith.constant 0 : i32
    %c0_i32_0 = arith.constant 0 : i32
    %c0_i32_1 = arith.constant 0 : i32
    return %c0_i32, %c0_i32_0 : i32, i32
  }
  func.func @transform_2(%arg0: i32) -> (i32, i32) {
    %c0_i32 = arith.constant 0 : i32
    %c0_i32_0 = arith.constant 0 : i32
    %c0_i32_1 = arith.constant 0 : i32
    return %c0_i32, %c0_i32_0 : i32, i32
  }
  func.func @transform_3(%arg0: i32) -> (i32, i32) {
    %c0_i32 = arith.constant 0 : i32
    %c0_i32_0 = arith.constant 0 : i32
    %c0_i32_1 = arith.constant 0 : i32
    return %c0_i32, %c0_i32_0 : i32, i32
  }
  func.func @transform_4(%arg0: i32) -> (i32, i32) {
    %c0_i32 = arith.constant 0 : i32
    %c0_i32_0 = arith.constant 0 : i32
    %c0_i32_1 = arith.constant 0 : i32
    return %c0_i32, %c0_i32_0 : i32, i32
  }
  func.func @transform_5(%arg0: i32) -> (i32, i32) {
    %c0_i32 = arith.constant 0 : i32
    %c0_i32_0 = arith.constant 0 : i32
    %c0_i32_1 = arith.constant 0 : i32
    return %c0_i32, %c0_i32_0 : i32, i32
  }
  func.func @transform_6(%arg0: i32) -> (i32, i32) {
    %c0_i32 = arith.constant 0 : i32
    %c0_i32_0 = arith.constant 0 : i32
    %c0_i32_1 = arith.constant 0 : i32
    return %c0_i32, %c0_i32_0 : i32, i32
  }
  func.func @transform_7(%arg0: i32) -> (i32, i32) {
    %c0_i32 = arith.constant 0 : i32
    %c0_i32_0 = arith.constant 0 : i32
    %c0_i32_1 = arith.constant 0 : i32
    return %c0_i32, %c0_i32_0 : i32, i32
  }
  func.func @transform_8(%arg0: i32) -> (i32, i32) {
    %c0_i32 = arith.constant 0 : i32
    %c0_i32_0 = arith.constant 0 : i32
    return %c0_i32, %arg0 : i32, i32
  }
}

</mosaic_0001>

<llo_original>
// kernel: a_call__.1
$region0: #{a_call__.1}
  #allocation0 [shape = 'u32[]', space=smem, size = 0x4, offset = 0x4, fixed_abs, tag = 'smem constant byte address 0x4 - core index']
  #allocation1 [shape = 'u32[144,128]{1,0:T(1,128)}', space=vmem, size = 0x12000, scoped, tag = 'internal scratch']
  #allocation2 [shape = 'bf16[16,256]{1,0:T(8,128)(2,1)}', space=vmem, size = 0x2000, scoped, tag = 'scratch operand']
  %s0 = inlined_call_operand.vmem [shape: bf16[64,512], index: 0, kind: input, shape index: {}]
  %s1 = inlined_call_operand.vmem [shape: bf16[16,144], index: 1, kind: input, shape index: {}]
  %s2 = inlined_call_operand.vmem [shape: f32[16,1], index: 2, kind: input, shape index: {}]
  %s3 = inlined_call_operand.vmem [shape: f32[1,128], index: 3, kind: input, shape index: {}]
  %s4 = inlined_call_operand.vmem [shape: bf16[16,144], index: 4, kind: input, shape index: {}]
  %s5 = inlined_call_operand.vmem [shape: f32[16,1], index: 5, kind: input, shape index: {}]
  %s6 = inlined_call_operand.vmem [shape: bf16[16,16], index: 6, kind: input, shape index: {}]
  %s7 = inlined_call_operand.vmem [shape: f32[16,1], index: 7, kind: input, shape index: {}]
  %s8 = inlined_call_operand.vmem [shape: f32[16,256], index: 8, kind: output, shape index: {}]
  %s9 = sld [smem:[#allocation0]]
  $region137: #{a_call__.1} parent=0
    _
  %s11 = ssub.s32 1, %s9
  %s12 = scalar_select 0, %s11, %s9
  $region1: #{a_call__.1} parent=0
    #allocation3 [shape = 'u8[65536]{0}', space=vmem, size = 0x10000, scoped, tag = 'input window, operand 0']
    #allocation4 [shape = 'u8[16384]{0}', space=vmem, size = 0x4000, scoped, tag = 'output window, operand 0']
    loop: start=0, step=1, limit=4
    $region2: #{a_call__.1} parent=1 // loop_pre_header
      _
    $region3: #{a_call__.1} parent=1 // loop_header
      %s14 = sphi 0, %s18
      %p15 = scmp.ge.s32.totalorder %s14, 4
      %s24 = sphi 0, %s26
      %s27 = sphi 0, %s24
      %s28 = sphi 0, %s27
      %s44 = sphi 0, %s28
      %s48 = sphi 0, %s48
      %s50 = sphi 0, %s48
      %s51 = sphi 0, %s50
      %s65 = sphi 0, %s51
      %s69 = sphi 0, %s69
      %s71 = sphi 0, %s69
      %s72 = sphi 0, %s71
      %s86 = sphi 0, %s72
      %s90 = sphi 0, %s90
      %s92 = sphi 0, %s90
      %s93 = sphi 0, %s92
      %s107 = sphi 0, %s93
      %s111 = sphi 0, %s111
      %s113 = sphi 0, %s111
      %s114 = sphi 0, %s113
      %s128 = sphi 0, %s114
      %s132 = sphi 0, %s132
      %s134 = sphi 0, %s132
      %s135 = sphi 0, %s134
      %s149 = sphi 0, %s135
      %s153 = sphi 0, %s153
      %s155 = sphi 0, %s153
      %s156 = sphi 0, %s155
      %s170 = sphi 0, %s156
      %s174 = sphi 0, %s174
      %s176 = sphi 0, %s174
      %s177 = sphi 0, %s176
      %s191 = sphi 0, %s177
      %s197 = sphi 0, %s199
      %s200 = sphi 0, %s197
      %s201 = sphi 0, %s200
      %s217 = sphi 0, %s201
    $region4: #{a_call__.1} parent=1 // loop_header_branch
      %17 = sbr.rel (%p15) target = $region8
    $region5: #{a_call__.1} parent=1 // loop_body
      %s19 = ssub.s32 %s14, 1
      %s20 = ssub.s32 %s14, 2
      %s21 = sadd.s32 %s14, 1
      %s22 = ssub.s32 %s14, %s21
      %p23 = scmp.eq.s32.totalorder %s22, 0
      %s25 = sadd.s32 %s24, 1
      %s26 = scalar_select %p23, %s24, %s25
      %p29 = pneg %p23
      %p30 = scmp.eq.s32.totalorder %s14, 1
      %p31 = por %p29, %p30
      %p32 = scmp.ne.s32.totalorder %s24, %s27
      %p33 = scmp.eq.s32.totalorder %s14, 0
      %p34 = por %p32, %p33
      %p35 = scmp.ne.s32.totalorder %s24, %s27
      %p36 = scmp.eq.s32.totalorder %s19, 1
      %p37 = por %p35, %p36
      %p38 = scmp.ne.s32.totalorder %s27, %s28
      %p39 = scmp.eq.s32.totalorder %s19, 0
      %p40 = por %p38, %p39
      %p41 = scmp.ne.s32.totalorder %s27, %s28
      %p42 = scmp.eq.s32.totalorder %s20, 1
      %p43 = por %p41, %p42
      %p45 = scmp.ne.s32.totalorder %s28, %s44
      %p46 = scmp.eq.s32.totalorder %s20, 0
      %p47 = por %p45, %p46
      %s49 = sadd.s32 %s48, 1
      %p52 = scmp.eq.s32.totalorder %s14, 1
      %p53 = scmp.ne.s32.totalorder %s48, %s50
      %p54 = scmp.eq.s32.totalorder %s14, 0
      %p55 = por %p53, %p54
      %p56 = scmp.ne.s32.totalorder %s48, %s50
      %p57 = scmp.eq.s32.totalorder %s19, 1
      %p58 = por %p56, %p57
      %p59 = scmp.ne.s32.totalorder %s50, %s51
      %p60 = scmp.eq.s32.totalorder %s19, 0
      %p61 = por %p59, %p60
      %p62 = scmp.ne.s32.totalorder %s50, %s51
      %p63 = scmp.eq.s32.totalorder %s20, 1
      %p64 = por %p62, %p63
      %p66 = scmp.ne.s32.totalorder %s51, %s65
      %p67 = scmp.eq.s32.totalorder %s20, 0
      %p68 = por %p66, %p67
      %s70 = sadd.s32 %s69, 1
      %p73 = scmp.eq.s32.totalorder %s14, 1
      %p74 = scmp.ne.s32.totalorder %s69, %s71
      %p75 = scmp.eq.s32.totalorder %s14, 0
      %p76 = por %p74, %p75
      %p77 = scmp.ne.s32.totalorder %s69, %s71
      %p78 = scmp.eq.s32.totalorder %s19, 1
      %p79 = por %p77, %p78
      %p80 = scmp.ne.s32.totalorder %s71, %s72
      %p81 = scmp.eq.s32.totalorder %s19, 0
      %p82 = por %p80, %p81
      %p83 = scmp.ne.s32.totalorder %s71, %s72
      %p84 = scmp.eq.s32.totalorder %s20, 1
      %p85 = por %p83, %p84
      %p87 = scmp.ne.s32.totalorder %s72, %s86
      %p88 = scmp.eq.s32.totalorder %s20, 0
      %p89 = por %p87, %p88
      %s91 = sadd.s32 %s90, 1
      %p94 = scmp.eq.s32.totalorder %s14, 1
      %p95 = scmp.ne.s32.totalorder %s90, %s92
      %p96 = scmp.eq.s32.totalorder %s14, 0
      %p97 = por %p95, %p96
      %p98 = scmp.ne.s32.totalorder %s90, %s92
      %p99 = scmp.eq.s32.totalorder %s19, 1
      %p100 = por %p98, %p99
      %p101 = scmp.ne.s32.totalorder %s92, %s93
      %p102 = scmp.eq.s32.totalorder %s19, 0
      %p103 = por %p101, %p102
      %p104 = scmp.ne.s32.totalorder %s92, %s93
      %p105 = scmp.eq.s32.totalorder %s20, 1
      %p106 = por %p104, %p105
      %p108 = scmp.ne.s32.totalorder %s93, %s107
      %p109 = scmp.eq.s32.totalorder %s20, 0
      %p110 = por %p108, %p109
      %s112 = sadd.s32 %s111, 1
      %p115 = scmp.eq.s32.totalorder %s14, 1
      %p116 = scmp.ne.s32.totalorder %s111, %s113
      %p117 = scmp.eq.s32.totalorder %s14, 0
      %p118 = por %p116, %p117
      %p119 = scmp.ne.s32.totalorder %s111, %s113
      %p120 = scmp.eq.s32.totalorder %s19, 1
      %p121 = por %p119, %p120
      %p122 = scmp.ne.s32.totalorder %s113, %s114
      %p123 = scmp.eq.s32.totalorder %s19, 0
      %p124 = por %p122, %p123
      %p125 = scmp.ne.s32.totalorder %s113, %s114
      %p126 = scmp.eq.s32.totalorder %s20, 1
      %p127 = por %p125, %p126
      %p129 = scmp.ne.s32.totalorder %s114, %s128
      %p130 = scmp.eq.s32.totalorder %s20, 0
      %p131 = por %p129, %p130
      %s133 = sadd.s32 %s132, 1
      %p136 = scmp.eq.s32.totalorder %s14, 1
      %p137 = scmp.ne.s32.totalorder %s132, %s134
      %p138 = scmp.eq.s32.totalorder %s14, 0
      %p139 = por %p137, %p138
      %p140 = scmp.ne.s32.totalorder %s132, %s134
      %p141 = scmp.eq.s32.totalorder %s19, 1
      %p142 = por %p140, %p141
      %p143 = scmp.ne.s32.totalorder %s134, %s135
      %p144 = scmp.eq.s32.totalorder %s19, 0
      %p145 = por %p143, %p144
      %p146 = scmp.ne.s32.totalorder %s134, %s135
      %p147 = scmp.eq.s32.totalorder %s20, 1
      %p148 = por %p146, %p147
      %p150 = scmp.ne.s32.totalorder %s135, %s149
      %p151 = scmp.eq.s32.totalorder %s20, 0
      %p152 = por %p150, %p151
      %s154 = sadd.s32 %s153, 1
      %p157 = scmp.eq.s32.totalorder %s14, 1
      %p158 = scmp.ne.s32.totalorder %s153, %s155
      %p159 = scmp.eq.s32.totalorder %s14, 0
      %p160 = por %p158, %p159
      %p161 = scmp.ne.s32.totalorder %s153, %s155
      %p162 = scmp.eq.s32.totalorder %s19, 1
      %p163 = por %p161, %p162
      %p164 = scmp.ne.s32.totalorder %s155, %s156
      %p165 = scmp.eq.s32.totalorder %s19, 0
      %p166 = por %p164, %p165
      %p167 = scmp.ne.s32.totalorder %s155, %s156
      %p168 = scmp.eq.s32.totalorder %s20, 1
      %p169 = por %p167, %p168
      %p171 = scmp.ne.s32.totalorder %s156, %s170
      %p172 = scmp.eq.s32.totalorder %s20, 0
      %p173 = por %p171, %p172
      %s175 = sadd.s32 %s174, 1
      %p178 = scmp.eq.s32.totalorder %s14, 1
      %p179 = scmp.ne.s32.totalorder %s174, %s176
      %p180 = scmp.eq.s32.totalorder %s14, 0
      %p181 = por %p179, %p180
      %p182 = scmp.ne.s32.totalorder %s174, %s176
      %p183 = scmp.eq.s32.totalorder %s19, 1
      %p184 = por %p182, %p183
      %p185 = scmp.ne.s32.totalorder %s176, %s177
      %p186 = scmp.eq.s32.totalorder %s19, 0
      %p187 = por %p185, %p186
      %p188 = scmp.ne.s32.totalorder %s176, %s177
      %p189 = scmp.eq.s32.totalorder %s20, 1
      %p190 = por %p188, %p189
      %p192 = scmp.ne.s32.totalorder %s177, %s191
      %p193 = scmp.eq.s32.totalorder %s20, 0
      %p194 = por %p192, %p193
      %s195 = ssub.s32 %s14, %s21
      %p196 = scmp.eq.s32.totalorder %s195, 0
      %s198 = sadd.s32 %s197, 1
      %s199 = scalar_select %p196, %s197, %s198
      %p202 = pneg %p196
      %p203 = scmp.eq.s32.totalorder %s14, 1
      %p204 = por %p202, %p203
      %p205 = scmp.ne.s32.totalorder %s197, %s200
      %p206 = scmp.eq.s32.totalorder %s14, 0
      %p207 = por %p205, %p206
      %p208 = scmp.ne.s32.totalorder %s197, %s200
      %p209 = scmp.eq.s32.totalorder %s19, 1
      %p210 = por %p208, %p209
      %p211 = scmp.ne.s32.totalorder %s200, %s201
      %p212 = scmp.eq.s32.totalorder %s19, 0
      %p213 = por %p211, %p212
      %p214 = scmp.ne.s32.totalorder %s200, %s201
      %p215 = scmp.eq.s32.totalorder %s20, 1
      %p216 = por %p214, %p215
      %p218 = scmp.ne.s32.totalorder %s201, %s217
      %p219 = scmp.eq.s32.totalorder %s20, 0
      %p220 = por %p218, %p219
      %p221 = scmp.le.s32.totalorder 1, %s14
      %p222 = scmp.lt.s32.totalorder %s14, 3
      %p223 = pnand %p221, %p222
      %p224 = pneg %p223
      // Predicated region
      $region9: #{a_call__.1} parent=5 // pred_check
        _
      $region10: #{a_call__.1} parent=5 // pred_check_branch
        %226 = sbr.rel (%p223) target = $region12
      $region11: #{a_call__.1} parent=5 // pred_region
        %s227 = ssub.s32 %s14, 1
        // Predicated region
        $region13: #{a_call__.1} parent=11 // pred_check
          %p228 = pneg %p61
        $region14: #{a_call__.1} parent=11 // pred_check_branch
          %230 = sbr.rel (%p228) target = $region16
        $region15: #{a_call__.1} parent=11 // pred_region
          _
        $region16: #{a_call__.1} parent=11 // pred_fallthru
          _
        // Predicated region
        $region17: #{a_call__.1} parent=11 // pred_check
          %p231 = pneg %p82
        $region18: #{a_call__.1} parent=11 // pred_check_branch
          %233 = sbr.rel (%p231) target = $region20
        $region19: #{a_call__.1} parent=11 // pred_region
          _
        $region20: #{a_call__.1} parent=11 // pred_fallthru
          _
        // Predicated region
        $region21: #{a_call__.1} parent=11 // pred_check
          %p234 = pneg %p103
        $region22: #{a_call__.1} parent=11 // pred_check_branch
          %236 = sbr.rel (%p234) target = $region24
        $region23: #{a_call__.1} parent=11 // pred_region
          _
        $region24: #{a_call__.1} parent=11 // pred_fallthru
          _
        // Predicated region
        $region25: #{a_call__.1} parent=11 // pred_check
          %p237 = pneg %p124
        $region26: #{a_call__.1} parent=11 // pred_check_branch
          %239 = sbr.rel (%p237) target = $region28
        $region27: #{a_call__.1} parent=11 // pred_region
          _
        $region28: #{a_call__.1} parent=11 // pred_fallthru
          _
        // Predicated region
        $region29: #{a_call__.1} parent=11 // pred_check
          %p240 = pneg %p145
        $region30: #{a_call__.1} parent=11 // pred_check_branch
          %242 = sbr.rel (%p240) target = $region32
        $region31: #{a_call__.1} parent=11 // pred_region
          _
        $region32: #{a_call__.1} parent=11 // pred_fallthru
          _
        // Predicated region
        $region33: #{a_call__.1} parent=11 // pred_check
          %p243 = pneg %p166
        $region34: #{a_call__.1} parent=11 // pred_check_branch
          %245 = sbr.rel (%p243) target = $region36
        $region35: #{a_call__.1} parent=11 // pred_region
          _
        $region36: #{a_call__.1} parent=11 // pred_fallthru
          _
        // Predicated region
        $region37: #{a_call__.1} parent=11 // pred_check
          %p246 = pneg %p187
        $region38: #{a_call__.1} parent=11 // pred_check_branch
          %248 = sbr.rel (%p246) target = $region40
        $region39: #{a_call__.1} parent=11 // pred_region
          _
        $region40: #{a_call__.1} parent=11 // pred_fallthru
          _
      $region12: #{a_call__.1} parent=5 // pred_fallthru
        _
      %p249 = scmp.lt.s32.totalorder %s14, 2
      // Predicated region
      $region41: #{a_call__.1} parent=5 // pred_check
        %p250 = pneg %p249
      $region42: #{a_call__.1} parent=5 // pred_check_branch
        %252 = sbr.rel (%p250) target = $region44
      $region43: #{a_call__.1} parent=5 // pred_region
        // Predicated region
        $region45: #{a_call__.1} parent=43 // pred_check
          %p253 = pneg %p34
        $region46: #{a_call__.1} parent=43 // pred_check_branch
          %255 = sbr.rel (%p253) target = $region48
        $region47: #{a_call__.1} parent=43 // pred_region
          %s256 = sand.u32 %s24, 1
          %s257 = sand.u32 %s24, 1
          %s258 = smul.addr %s257, 64
          %s259 = scalar_lea.vmem [#allocation3], %s258
          %s260 = smul.u32 2, %s14
          %s261 = smul.addr %s260, 4
          %s262 = scalar_lea.vmem %s0, %s261
          // Predicated region
          $region49: #{a_call__.1} parent=47 // pred_check
            _
          $region50: #{a_call__.1} parent=47 // pred_check_branch
            %264 = sbr.rel (0) target = $region52
          $region51: #{a_call__.1} parent=47 // pred_region
            // Predicated region
            $region53: #{a_call__.1} parent=51 // pred_check
              _
            $region54: #{a_call__.1} parent=51 // pred_check_branch
              %266 = sbr.rel (0) target = $region56
            $region55: #{a_call__.1} parent=51 // pred_region
              // Predicated region
              $region68: #{a_call__.1} parent=55 // pred_check
                _
              $region69: #{a_call__.1} parent=55 // pred_check_branch
                %296 = sbr.rel (0) target = $region71
              $region70: #{a_call__.1} parent=55 // pred_region
                loop: start=0, step=1, limit=1
                $region72: #{a_call__.1} parent=70 // loop_pre_header
                  _
                $region73: #{a_call__.1} parent=70 // loop_header
                  %s298 = sphi 0, %s302
                  %p299 = scmp.ge.s32.totalorder %s298, 1
                  %s303 = sphi %s262, %s262
                  %s304 = sphi %s259, %s259
                $region74: #{a_call__.1} parent=70 // loop_header_branch
                  %301 = sbr.rel (%p299) target = $region78
                $region75: #{a_call__.1} parent=70 // loop_body
                  %v305 = vld [vmem:[%s303] sm:$0xff]
                  %306 = vst [vmem:[%s304] sm:$0xff] %v305
                  %v307 = vld [vmem:[%s303 + $0x10] sm:$0xff]
                  %308 = vst [vmem:[%s304 + $0x8] sm:$0xff] %v307
                  %v309 = vld [vmem:[%s303 + $0x20] sm:$0xff]
                  %310 = vst [vmem:[%s304 + $0x10] sm:$0xff] %v309
                  %v311 = vld [vmem:[%s303 + $0x30] sm:$0xff]
                  %312 = vst [vmem:[%s304 + $0x18] sm:$0xff] %v311
                  %v313 = vld [vmem:[%s303 + $0x40] sm:$0xff]
                  %314 = vst [vmem:[%s304 + $0x20] sm:$0xff] %v313
                  %v315 = vld [vmem:[%s303 + $0x50] sm:$0xff]
                  %316 = vst [vmem:[%s304 + $0x28] sm:$0xff] %v315
                  %v317 = vld [vmem:[%s303 + $0x60] sm:$0xff]
                  %318 = vst [vmem:[%s304 + $0x30] sm:$0xff] %v317
                  %v319 = vld [vmem:[%s303 + $0x70] sm:$0xff]
                  %320 = vst [vmem:[%s304 + $0x38] sm:$0xff] %v319
                $region76: #{a_call__.1} parent=70 // loop_footer
                  %s302 = sadd.s32 1, %s298
                $region77: #{a_call__.1} parent=70 // loop_footer_branch
                  %297 = sbr.rel target = $region73
                $region78: #{a_call__.1} parent=70 // loop_exit
                  _
              $region71: #{a_call__.1} parent=55 // pred_fallthru
                _
              // Predicated region
              $region79: #{a_call__.1} parent=55 // pred_check
                _
              $region80: #{a_call__.1} parent=55 // pred_check_branch
                %322 = sbr.rel target = $region82
              $region81: #{a_call__.1} parent=55 // pred_region
                _
              $region82: #{a_call__.1} parent=55 // pred_fallthru
                _
            $region56: #{a_call__.1} parent=51 // pred_fallthru
              _
            // Predicated region
            $region57: #{a_call__.1} parent=51 // pred_check
              _
            $region58: #{a_call__.1} parent=51 // pred_check_branch
              %268 = sbr.rel target = $region60
            $region59: #{a_call__.1} parent=51 // pred_region
              %s270 = ssub.s32 256, 1
              loop: start=0, step=1, limit=1
              $region61: #{a_call__.1} parent=59 // loop_pre_header
                _
              $region62: #{a_call__.1} parent=59 // loop_header
                %s272 = sphi 0, %s276
                %p273 = scmp.ge.s32.totalorder %s272, 1
                %s277 = sphi %s262, %s262
                %s278 = sphi %s259, %s259
              $region63: #{a_call__.1} parent=59 // loop_header_branch
                %275 = sbr.rel (%p273) target = $region67
              $region64: #{a_call__.1} parent=59 // loop_body
                %v279 = vld [vmem:[%s277] sm:%s270]
                %280 = vst [vmem:[%s278] sm:%s270] %v279
                %v281 = vld [vmem:[%s277 + $0x10] sm:%s270]
                %282 = vst [vmem:[%s278 + $0x8] sm:%s270] %v281
                %v283 = vld [vmem:[%s277 + $0x20] sm:%s270]
                %284 = vst [vmem:[%s278 + $0x10] sm:%s270] %v283
                %v285 = vld [vmem:[%s277 + $0x30] sm:%s270]
                %286 = vst [vmem:[%s278 + $0x18] sm:%s270] %v285
                %v287 = vld [vmem:[%s277 + $0x40] sm:%s270]
                %288 = vst [vmem:[%s278 + $0x20] sm:%s270] %v287
                %v289 = vld [vmem:[%s277 + $0x50] sm:%s270]
                %290 = vst [vmem:[%s278 + $0x28] sm:%s270] %v289
                %v291 = vld [vmem:[%s277 + $0x60] sm:%s270]
                %292 = vst [vmem:[%s278 + $0x30] sm:%s270] %v291
                %v293 = vld [vmem:[%s277 + $0x70] sm:%s270]
                %294 = vst [vmem:[%s278 + $0x38] sm:%s270] %v293
              $region65: #{a_call__.1} parent=59 // loop_footer
                %s276 = sadd.s32 1, %s272
              $region66: #{a_call__.1} parent=59 // loop_footer_branch
                %271 = sbr.rel target = $region62
              $region67: #{a_call__.1} parent=59 // loop_exit
                _
            $region60: #{a_call__.1} parent=51 // pred_fallthru
              _
          $region52: #{a_call__.1} parent=47 // pred_fallthru
            _
          %323 = vnop
        $region48: #{a_call__.1} parent=43 // pred_fallthru
          _
      $region44: #{a_call__.1} parent=5 // pred_fallthru
        _
      %p324 = scmp.le.s32.totalorder 1, %s14
      %p325 = scmp.lt.s32.totalorder %s14, 3
      %p326 = pnand %p324, %p325
      %p327 = pneg %p326
      // Predicated region
      $region83: #{a_call__.1} parent=5 // pred_check
        _
      $region84: #{a_call__.1} parent=5 // pred_check_branch
        %329 = sbr.rel (%p326) target = $region86
      $region85: #{a_call__.1} parent=5 // pred_region
        %s330 = ssub.s32 %s14, 1
        %s331 = sand.u32 %s27, 1
        %s332 = sand.u32 %s27, 1
        %s333 = smul.addr %s332, 64
        %s334 = scalar_lea.vmem [#allocation3], %s333
        // Predicated region
        $region87: #{a_call__.1} parent=85 // pred_check
          %p335 = pneg %p40
        $region88: #{a_call__.1} parent=85 // pred_check_branch
          %337 = sbr.rel (%p335) target = $region90
        $region89: #{a_call__.1} parent=85 // pred_region
          _
        $region90: #{a_call__.1} parent=85 // pred_fallthru
          _
        %s338 = sand.u32 %s27, 1
        %s339 = sand.u32 %s27, 1
        %s340 = smul.addr %s339, 64
        %s341 = scalar_lea.vmem [#allocation3], %s340
        %p342 = pneg %p40
        %p343 = pneg %p37
        %p344 = pneg %p61
        %p345 = pneg %p58
        %p346 = pneg %p82
        %p347 = pneg %p79
        %p348 = pneg %p103
        %p349 = pneg %p100
        %p350 = pneg %p124
        %p351 = pneg %p121
        %p352 = pneg %p145
        %p353 = pneg %p142
        %p354 = pneg %p166
        %p355 = pneg %p163
        %p356 = pneg %p187
        %p357 = pneg %p184
        %p358 = pneg %p213
        %p359 = pneg %p210
        %s360 = sand.u32 %s200, 1
        %s361 = sand.u32 %s200, 1
        %s362 = smul.addr %s361, 16
        %s363 = scalar_lea.vmem [#allocation4], %s362
        %s364 = smul.u32 2, %s19
        %366 = vst [vmem:[#allocation2] sm:$0xff] 0
        %367 = vst [vmem:[#allocation2 + $0x8] sm:$0xff] 0
        %v368 = vld [vmem:[%s1] sm:$0xff]
        %v369 = vld [vmem:[%s1 + $0x8] sm:$0xff]
        %v370 = vld [vmem:[%s2] sm:$0xff]
        %v371 = vld [vmem:[%s2 + $0x8] sm:$0xff]
        %v372 = vld [vmem:[%s3] sm:$0x1]
        %v373 = vld [vmem:[%s4] sm:$0xff]
        %v374 = vld [vmem:[%s4 + $0x8] sm:$0xff]
        %v375 = vld [vmem:[%s5] sm:$0xff]
        %v376 = vld [vmem:[%s5 + $0x8] sm:$0xff]
        %v377 = vld [vmem:[%s6] sm:$0xf]
        %v378 = vld [vmem:[%s6 + $0x4] sm:$0xf]
        %v379 = vld [vmem:[%s7] sm:$0xff]
        %v380 = vld [vmem:[%s7 + $0x8] sm:$0xff]
        %v381 = vld [vmem:[%s334] sm:$0xf]
        %v382 = vld [vmem:[%s334 + $0x8] sm:$0xf]
        %v383 = vld [vmem:[%s334 + $0x10] sm:$0xf]
        %v384 = vld [vmem:[%s334 + $0x18] sm:$0xf]
        %v385 = vld [vmem:[%s334] sm:$0xff]
        %v386 = vld [vmem:[%s334 + $0x8] sm:$0xff]
        %v387 = vld [vmem:[%s334 + $0x20] sm:$0xf]
        %v388 = vld [vmem:[%s334 + $0x28] sm:$0xf]
        %v389 = vld [vmem:[%s334 + $0x30] sm:$0xf]
        %v390 = vld [vmem:[%s334 + $0x38] sm:$0xf]
        %v391 = vld [vmem:[%s334 + $0x20] sm:$0xff]
        %v392 = vld [vmem:[%s334 + $0x28] sm:$0xff]
        %v393 = vld [vmem:[%s334 + $0x10] sm:$0xff]
        %v394 = vld [vmem:[%s334 + $0x18] sm:$0xff]
        %v397 = vunpack.c.l.b16 %v381
        %v398 = vunpack.c.l.b16 %v382
        %v399 = vpack.c.b16 %v398, %v397
        %v403 = vunpack.c.l.b16 %v383
        %v404 = vunpack.c.l.b16 %v384
        %v405 = vpack.c.b16 %v404, %v403
        %v409 = vunpack.c.l.b16 %v385
        %v410 = vunpack.c.h.b16 %v385
        %v411 = vunpack.c.l.b16 %v386
        %v412 = vunpack.c.h.b16 %v386
        %v413 = vpack.c.b16 %v411, %v409
        %v414 = vpack.c.b16 %v412, %v410
        %415 = vrot.lane.b32.xlu0 %v413, 127
        %v416 = vpop.permute.xlu0 %415
        %417 = vrot.lane.b32.xlu0 %v414, 127
        %v418 = vpop.permute.xlu0 %417
        %vm419 = vcmask 1039360
        %v420 = vsel %vm419, %v416, %v418
        %v424 = vunpack.c.l.b16 %v387
        %v425 = vunpack.c.l.b16 %v388
        %v426 = vpack.c.b16 %v425, %v424
        %v430 = vunpack.c.l.b16 %v389
        %v431 = vunpack.c.l.b16 %v390
        %v432 = vpack.c.b16 %v431, %v430
        %v436 = vunpack.c.l.b16 %v391
        %v437 = vunpack.c.h.b16 %v391
        %v438 = vunpack.c.l.b16 %v392
        %v439 = vunpack.c.h.b16 %v392
        %v440 = vpack.c.b16 %v438, %v436
        %v441 = vpack.c.b16 %v439, %v437
        %442 = vrot.lane.b32.xlu0 %v440, 127
        %v443 = vpop.permute.xlu0 %442
        %444 = vrot.lane.b32.xlu0 %v441, 127
        %v445 = vpop.permute.xlu0 %444
        %v446 = vsel %vm419, %v443, %v445
        %448 = vrot.lane.b32.xlu0 %v413, 118
        %v449 = vpop.permute.xlu0 %448
        %450 = vrot.lane.b32.xlu0 %v414, 118
        %v451 = vpop.permute.xlu0 %450
        %vm452 = vcmask 965632
        %v453 = vsel %vm452, %v449, %v451
        %v457 = vunpack.c.l.b16 %v393
        %v458 = vunpack.c.h.b16 %v393
        %v459 = vunpack.c.l.b16 %v394
        %v460 = vunpack.c.h.b16 %v394
        %v461 = vpack.c.b16 %v459, %v457
        %v462 = vpack.c.b16 %v460, %v458
        %463 = vrot.lane.b32.xlu0 %v461, 118
        %v464 = vpop.permute.xlu0 %463
        %465 = vrot.lane.b32.xlu0 %v462, 118
        %v466 = vpop.permute.xlu0 %465
        %v467 = vsel %vm452, %v464, %v466
        %469 = vrot.lane.b32.xlu0 %v413, 117
        %v470 = vpop.permute.xlu0 %469
        %471 = vrot.lane.b32.xlu0 %v414, 117
        %v472 = vpop.permute.xlu0 %471
        %vm473 = vcmask 957440
        %v474 = vsel %vm473, %v470, %v472
        %477 = vset.pattern.permute.xlu0 0
        %478 = vperm.xlu0 %477, %v370
        %v479 = vpop.permute.xlu0 %478
        %482 = vset.pattern.permute.xlu0 0
        %483 = vperm.xlu0 %482, %v371
        %v484 = vpop.permute.xlu0 %483
        %v488 = vunpack.c.l.b16 %v368
        %v489 = vunpack.c.h.b16 %v368
        %v490 = vunpack.c.l.b16 %v369
        %v491 = vunpack.c.h.b16 %v369
        %v492 = vpack.c.b16 %v490, %v488
        %v493 = vpack.c.b16 %v491, %v489
        %vm495 = vcmask 130048
        %v497 = vsel %vm495, %v493, 0
        %499 = vmatprep.subr.bf16.mxu0 0
        %500 = vmatpush1.bf16.msra.mxu0 %v467
        %501 = vmatprep.subr.bf16.mxu0 0
        %502 = vmatpush1.bf16.msra.mxu0 %v453
        %503 = vmatprep.subr.bf16.mxu0 0
        %504 = vmatpush1.bf16.msra.mxu0 %v446
        %505 = vmatprep.subr.bf16.mxu0 0
        %506 = vmatpush1.bf16.msra.mxu0 %v432
        %507 = vmatprep.subr.bf16.mxu0 0
        %508 = vmatpush1.bf16.msra.mxu0 %v426
        %509 = vmatprep.subr.bf16.mxu0 0
        %510 = vmatpush1.bf16.msra.mxu0 %v420
        %511 = vmatprep.subr.bf16.mxu0 0
        %512 = vmatpush1.bf16.msra.mxu0 %v405
        %513 = vmatprep.subr.bf16.mxu0 0
        %514 = vmatpush1.bf16.msra.mxu0 %v399
        %515 = vmatprep.subr.bf16.mxu0 0
        %516 = vmatpush2.bf16.msra.mxu0 0
        %517 = vmatprep.subr.bf16.mxu0 0
        %518 = vmatpush2.bf16.msra.mxu0 0
        %519 = vmatprep.subr.bf16.mxu0 0
        %520 = vmatpush2.bf16.msra.mxu0 0
        %521 = vmatprep.subr.bf16.mxu0 0
        %522 = vmatpush2.bf16.msra.mxu0 0
        %523 = vmatprep.subr.bf16.mxu0 0
        %524 = vmatpush2.bf16.msra.mxu0 0
        %525 = vmatprep.subr.bf16.mxu0 0
        %526 = vmatpush2.bf16.msra.mxu0 0
        %527 = vmatprep.subr.bf16.mxu0 0
        %528 = vmatpush2.bf16.msra.mxu0 0
        %529 = vmatprep.subr.bf16.mxu0 0
        %530 = vmatpush2.bf16.msra.mxu0 %v474
        %531 = vmatprep.mubr.bf16.mxu0 %v497
        %532 = vmatmul.mubr.bf16.gmra.mxu0 %v492
        %v533 = vpop.f32.mrf.mxu0
        %v534 = vadd.f32 %v479, %v533
        %v535 = vpop.f32.mrf.mxu0
        %v536 = vpop.f32.mrf.mxu0
        %v537 = vadd.f32 %v484, %v536
        %v538 = vpop.f32.mrf.mxu0
        %539 = vdwg.mxu0
        %v540 = vmax.f32 %v534, 0.0
        %v541 = vmax.f32 %v537, 0.0
        %v543 = vlaneseq
        %v544 = vshrl.u32 %v543, 7
        %v545 = vsub.s32 0, %v544
        %v546 = vrot.slane %v372, %v545
        %v548 = vmul.f32 %v540, %v546
        %v549 = vmul.f32 %v541, %v546
        %v550 = vpack.c.bf16 %v549, %v548
        %v552 = vunpack.c.l.b16 %v550
        %v553 = vunpack.c.h.b16 %v550
        %v554 = vpack.c.b16 %v552, %v552
        %v555 = vpack.c.b16 %v553, %v553
        %556 = vrot.lane.b32.xlu0 %v554, 11
        %v557 = vpop.permute.xlu0 %556
        %558 = vrot.lane.b32.xlu0 %v555, 11
        %v559 = vpop.permute.xlu0 %558
        %v560 = vrot.slane %v557, 4
        %v561 = vrot.slane %v559, 4
        %vm562 = vcmask 89088
        %v563 = vsel %vm562, %v560, %v557
        %v564 = vsel %vm562, %v561, %v559
        %vm567 = vcmask 1043544
        %vm568 = vcmask 89092
        %vm569 = vmor %vm568, %vm567
        %570 = vst.msk [vmem:[#allocation2] sm:$0xff] %vm569, %v563
        %571 = vst.msk [vmem:[#allocation2 + $0x8] sm:$0xff] %vm569, %v564
        %v572 = vld [vmem:[#allocation2] sm:$0xf]
        %v573 = vld [vmem:[#allocation2 + $0x8] sm:$0xf]
        %v574 = vld [vmem:[#allocation2] sm:$0xff]
        %v575 = vld [vmem:[#allocation2 + $0x8] sm:$0xff]
        %v578 = vunpack.c.l.b16 %v572
        %v579 = vunpack.c.l.b16 %v573
        %v580 = vpack.c.b16 %v579, %v578
        %v584 = vunpack.c.l.b16 %v574
        %v585 = vunpack.c.h.b16 %v574
        %v586 = vunpack.c.l.b16 %v575
        %v587 = vunpack.c.h.b16 %v575
        %v588 = vpack.c.b16 %v586, %v584
        %v589 = vpack.c.b16 %v587, %v585
        %590 = vrot.lane.b32.xlu0 %v588, 127
        %v591 = vpop.permute.xlu0 %590
        %592 = vrot.lane.b32.xlu0 %v589, 127
        %v593 = vpop.permute.xlu0 %592
        %v594 = vsel %vm419, %v591, %v593
        %596 = vrot.lane.b32.xlu0 %v588, 126
        %v597 = vpop.permute.xlu0 %596
        %598 = vrot.lane.b32.xlu0 %v589, 126
        %v599 = vpop.permute.xlu0 %598
        %vm600 = vcmask 1031168
        %v601 = vsel %vm600, %v597, %v599
        %603 = vrot.lane.b32.xlu0 %v588, 118
        %v604 = vpop.permute.xlu0 %603
        %605 = vrot.lane.b32.xlu0 %v589, 118
        %v606 = vpop.permute.xlu0 %605
        %v607 = vsel %vm452, %v604, %v606
        %609 = vrot.lane.b32.xlu0 %v588, 117
        %v610 = vpop.permute.xlu0 %609
        %611 = vrot.lane.b32.xlu0 %v589, 117
        %v612 = vpop.permute.xlu0 %611
        %v613 = vsel %vm473, %v610, %v612
        %615 = vrot.lane.b32.xlu0 %v588, 116
        %v616 = vpop.permute.xlu0 %615
        %617 = vrot.lane.b32.xlu0 %v589, 116
        %v618 = vpop.permute.xlu0 %617
        %vm619 = vcmask 949248
        %v620 = vsel %vm619, %v616, %v618
        %622 = vrot.lane.b32.xlu0 %v588, 108
        %v623 = vpop.permute.xlu0 %622
        %624 = vrot.lane.b32.xlu0 %v589, 108
        %v625 = vpop.permute.xlu0 %624
        %vm626 = vcmask 883712
        %v627 = vsel %vm626, %v623, %v625
        %629 = vrot.lane.b32.xlu0 %v588, 107
        %v630 = vpop.permute.xlu0 %629
        %631 = vrot.lane.b32.xlu0 %v589, 107
        %v632 = vpop.permute.xlu0 %631
        %vm633 = vcmask 875520
        %v634 = vsel %vm633, %v630, %v632
        %636 = vrot.lane.b32.xlu0 %v588, 106
        %v637 = vpop.permute.xlu0 %636
        %638 = vrot.lane.b32.xlu0 %v589, 106
        %v639 = vpop.permute.xlu0 %638
        %vm640 = vcmask 867328
        %v641 = vsel %vm640, %v637, %v639
        %644 = vset.pattern.permute.xlu0 0
        %645 = vperm.xlu0 %644, %v375
        %v646 = vpop.permute.xlu0 %645
        %649 = vset.pattern.permute.xlu0 0
        %650 = vperm.xlu0 %649, %v376
        %v651 = vpop.permute.xlu0 %650
        %v655 = vunpack.c.l.b16 %v373
        %v656 = vunpack.c.h.b16 %v373
        %v657 = vunpack.c.l.b16 %v374
        %v658 = vunpack.c.h.b16 %v374
        %v659 = vpack.c.b16 %v657, %v655
        %v660 = vpack.c.b16 %v658, %v656
        %v663 = vsel %vm495, %v660, 0
        %665 = vmatprep.subr.bf16.mxu0 0
        %666 = vmatpush1.bf16.msra.mxu0 %v634
        %667 = vmatprep.subr.bf16.mxu0 0
        %668 = vmatpush1.bf16.msra.mxu0 %v627
        %669 = vmatprep.subr.bf16.mxu0 0
        %670 = vmatpush1.bf16.msra.mxu0 %v620
        %671 = vmatprep.subr.bf16.mxu0 0
        %672 = vmatpush1.bf16.msra.mxu0 %v613
        %673 = vmatprep.subr.bf16.mxu0 0
        %674 = vmatpush1.bf16.msra.mxu0 %v607
        %675 = vmatprep.subr.bf16.mxu0 0
        %676 = vmatpush1.bf16.msra.mxu0 %v601
        %677 = vmatprep.subr.bf16.mxu0 0
        %678 = vmatpush1.bf16.msra.mxu0 %v594
        %679 = vmatprep.subr.bf16.mxu0 0
        %680 = vmatpush1.bf16.msra.mxu0 %v580
        %681 = vmatprep.subr.bf16.mxu0 0
        %682 = vmatpush2.bf16.msra.mxu0 0
        %683 = vmatprep.subr.bf16.mxu0 0
        %684 = vmatpush2.bf16.msra.mxu0 0
        %685 = vmatprep.subr.bf16.mxu0 0
        %686 = vmatpush2.bf16.msra.mxu0 0
        %687 = vmatprep.subr.bf16.mxu0 0
        %688 = vmatpush2.bf16.msra.mxu0 0
        %689 = vmatprep.subr.bf16.mxu0 0
        %690 = vmatpush2.bf16.msra.mxu0 0
        %691 = vmatprep.subr.bf16.mxu0 0
        %692 = vmatpush2.bf16.msra.mxu0 0
        %693 = vmatprep.subr.bf16.mxu0 0
        %694 = vmatpush2.bf16.msra.mxu0 0
        %695 = vmatprep.subr.bf16.mxu0 0
        %696 = vmatpush2.bf16.msra.mxu0 %v641
        %697 = vmatprep.mubr.bf16.mxu0 %v663
        %698 = vmatmul.mubr.bf16.gmra.mxu0 %v659
        %v699 = vpop.f32.mrf.mxu0
        %v700 = vadd.f32 %v646, %v699
        %v701 = vpop.f32.mrf.mxu0
        %v702 = vpop.f32.mrf.mxu0
        %v703 = vadd.f32 %v651, %v702
        %v704 = vpop.f32.mrf.mxu0
        %705 = vdwg.mxu0
        %v706 = vld [vmem:[%s334 + $0x30] sm:$0xf]
        %v707 = vld [vmem:[%s334 + $0x38] sm:$0xf]
        %v710 = vunpack.c.l.b16 %v377
        %v711 = vunpack.c.l.b16 %v378
        %v712 = vpack.c.b16 %v711, %v710
        %v715 = vunpack.c.l.b16 %v706
        %v716 = vunpack.c.l.b16 %v707
        %v717 = vpack.c.b16 %v716, %v715
        %v720 = vsel %vm495, %v712, 0
        %722 = vmatprep.subr.bf16.mxu0 0
        %723 = vmatpush1.bf16.msra.mxu0 0
        %724 = vmatprep.subr.bf16.mxu0 0
        %725 = vmatpush1.bf16.msra.mxu0 0
        %726 = vmatprep.subr.bf16.mxu0 0
        %727 = vmatpush1.bf16.msra.mxu0 0
        %728 = vmatprep.subr.bf16.mxu0 0
        %729 = vmatpush1.bf16.msra.mxu0 0
        %730 = vmatprep.subr.bf16.mxu0 0
        %731 = vmatpush1.bf16.msra.mxu0 0
        %732 = vmatprep.subr.bf16.mxu0 0
        %733 = vmatpush1.bf16.msra.mxu0 0
        %734 = vmatprep.subr.bf16.mxu0 0
        %735 = vmatpush1.bf16.msra.mxu0 0
        %736 = vmatprep.subr.bf16.mxu0 0
        %737 = vmatpush1.bf16.msra.mxu0 %v717
        %738 = vmatprep.subr.bf16.mxu0 0
        %739 = vmatpush2.bf16.msra.mxu0 0
        %740 = vmatprep.subr.bf16.mxu0 0
        %741 = vmatpush2.bf16.msra.mxu0 0
        %742 = vmatprep.subr.bf16.mxu0 0
        %743 = vmatpush2.bf16.msra.mxu0 0
        %744 = vmatprep.subr.bf16.mxu0 0
        %745 = vmatpush2.bf16.msra.mxu0 0
        %746 = vmatprep.subr.bf16.mxu0 0
        %747 = vmatpush2.bf16.msra.mxu0 0
        %748 = vmatprep.subr.bf16.mxu0 0
        %749 = vmatpush2.bf16.msra.mxu0 0
        %750 = vmatprep.subr.bf16.mxu0 0
        %751 = vmatpush2.bf16.msra.mxu0 0
        %752 = vmatprep.subr.bf16.mxu0 0
        %753 = vmatpush2.bf16.msra.mxu0 0
        %754 = vmatprep.mubr.bf16.mxu0 0
        %755 = vmatmul.mubr.bf16.gmra.mxu0 %v720
        %v756 = vpop.f32.mrf.mxu0
        %v757 = vadd.f32 0.0, %v756
        %v758 = vpop.f32.mrf.mxu0
        %v759 = vpop.f32.mrf.mxu0
        %v760 = vadd.f32 0.0, %v759
        %v761 = vpop.f32.mrf.mxu0
        %762 = vdwg.mxu0
        %v763 = vadd.f32 %v700, %v757
        %v764 = vadd.f32 %v703, %v760
        %766 = vset.pattern.permute.xlu0 0
        %767 = vperm.xlu0 %766, %v379
        %v768 = vpop.permute.xlu0 %767
        %771 = vset.pattern.permute.xlu0 0
        %772 = vperm.xlu0 %771, %v380
        %v773 = vpop.permute.xlu0 %772
        %v775 = vadd.f32 %v763, %v768
        %v776 = vadd.f32 %v764, %v773
        %v777 = vmax.f32 %v775, 0.0
        %v778 = vmax.f32 %v776, 0.0
        %779 = vst [vmem:[%s363] sm:$0xff] %v777
        %780 = vst [vmem:[%s363 + $0x8] sm:$0xff] %v778
        %s781 = sand.u32 %s200, 1
        %s782 = sand.u32 %s200, 1
        %s783 = smul.addr %s782, 16
        %s784 = scalar_lea.vmem [#allocation4], %s783
        // Predicated region
        $region91: #{a_call__.1} parent=85 // pred_check
          %p785 = pneg %p210
        $region92: #{a_call__.1} parent=85 // pred_check_branch
          %787 = sbr.rel (%p785) target = $region94
        $region93: #{a_call__.1} parent=85 // pred_region
          %s788 = smul.addr %s19, 8
          %s789 = scalar_lea.vmem %s8, %s788
          // Predicated region
          $region95: #{a_call__.1} parent=93 // pred_check
            _
          $region96: #{a_call__.1} parent=93 // pred_check_branch
            %791 = sbr.rel (0) target = $region98
          $region97: #{a_call__.1} parent=93 // pred_region
            // Predicated region
            $region99: #{a_call__.1} parent=97 // pred_check
              _
            $region100: #{a_call__.1} parent=97 // pred_check_branch
              %793 = sbr.rel (0) target = $region102
            $region101: #{a_call__.1} parent=97 // pred_region
              // Predicated region
              $region114: #{a_call__.1} parent=101 // pred_check
                _
              $region115: #{a_call__.1} parent=101 // pred_check_branch
                %811 = sbr.rel (0) target = $region117
              $region116: #{a_call__.1} parent=101 // pred_region
                loop: start=0, step=1, limit=1
                $region118: #{a_call__.1} parent=116 // loop_pre_header
                  _
                $region119: #{a_call__.1} parent=116 // loop_header
                  %s813 = sphi 0, %s817
                  %p814 = scmp.ge.s32.totalorder %s813, 1
                  %s818 = sphi %s784, %s784
                  %s819 = sphi %s789, %s789
                $region120: #{a_call__.1} parent=116 // loop_header_branch
                  %816 = sbr.rel (%p814) target = $region124
                $region121: #{a_call__.1} parent=116 // loop_body
                  %v820 = vld [vmem:[%s818] sm:$0xff]
                  %821 = vst [vmem:[%s819] sm:$0xff] %v820
                  %v822 = vld [vmem:[%s818 + $0x8] sm:$0xff]
                  %823 = vst [vmem:[%s819 + $0x10] sm:$0xff] %v822
                $region122: #{a_call__.1} parent=116 // loop_footer
                  %s817 = sadd.s32 1, %s813
                $region123: #{a_call__.1} parent=116 // loop_footer_branch
                  %812 = sbr.rel target = $region119
                $region124: #{a_call__.1} parent=116 // loop_exit
                  _
              $region117: #{a_call__.1} parent=101 // pred_fallthru
                _
              // Predicated region
              $region125: #{a_call__.1} parent=101 // pred_check
                _
              $region126: #{a_call__.1} parent=101 // pred_check_branch
                %825 = sbr.rel target = $region128
              $region127: #{a_call__.1} parent=101 // pred_region
                _
              $region128: #{a_call__.1} parent=101 // pred_fallthru
                _
            $region102: #{a_call__.1} parent=97 // pred_fallthru
              _
            // Predicated region
            $region103: #{a_call__.1} parent=97 // pred_check
              _
            $region104: #{a_call__.1} parent=97 // pred_check_branch
              %795 = sbr.rel target = $region106
            $region105: #{a_call__.1} parent=97 // pred_region
              %s797 = ssub.s32 256, 1
              loop: start=0, step=1, limit=1
              $region107: #{a_call__.1} parent=105 // loop_pre_header
                _
              $region108: #{a_call__.1} parent=105 // loop_header
                %s799 = sphi 0, %s803
                %p800 = scmp.ge.s32.totalorder %s799, 1
                %s804 = sphi %s784, %s784
                %s805 = sphi %s789, %s789
              $region109: #{a_call__.1} parent=105 // loop_header_branch
                %802 = sbr.rel (%p800) target = $region113
              $region110: #{a_call__.1} parent=105 // loop_body
                %v806 = vld [vmem:[%s804] sm:%s797]
                %807 = vst [vmem:[%s805] sm:%s797] %v806
                %v808 = vld [vmem:[%s804 + $0x8] sm:%s797]
                %809 = vst [vmem:[%s805 + $0x10] sm:%s797] %v808
              $region111: #{a_call__.1} parent=105 // loop_footer
                %s803 = sadd.s32 1, %s799
              $region112: #{a_call__.1} parent=105 // loop_footer_branch
                %798 = sbr.rel target = $region108
              $region113: #{a_call__.1} parent=105 // loop_exit
                _
            $region106: #{a_call__.1} parent=97 // pred_fallthru
              _
          $region98: #{a_call__.1} parent=93 // pred_fallthru
            _
          %826 = vnop
        $region94: #{a_call__.1} parent=85 // pred_fallthru
          _
      $region86: #{a_call__.1} parent=5 // pred_fallthru
        _
      %p827 = scmp.le.s32.totalorder 2, %s14
      // Predicated region
      $region129: #{a_call__.1} parent=5 // pred_check
        %p828 = pneg %p827
      $region130: #{a_call__.1} parent=5 // pred_check_branch
        %830 = sbr.rel (%p828) target = $region132
      $region131: #{a_call__.1} parent=5 // pred_region
        %s831 = ssub.s32 %s14, 2
        // Predicated region
        $region133: #{a_call__.1} parent=131 // pred_check
          %p832 = pneg %p216
        $region134: #{a_call__.1} parent=131 // pred_check_branch
          %834 = sbr.rel (%p832) target = $region136
        $region135: #{a_call__.1} parent=131 // pred_region
          %s835 = sand.u32 %s201, 1
          %s836 = sand.u32 %s201, 1
          %s837 = smul.addr %s836, 16
          %s838 = scalar_lea.vmem [#allocation4], %s837
        $region136: #{a_call__.1} parent=131 // pred_fallthru
          _
      $region132: #{a_call__.1} parent=5 // pred_fallthru
        _
    $region6: #{a_call__.1} parent=1 // loop_footer
      %s18 = sadd.s32 1, %s14
    $region7: #{a_call__.1} parent=1 // loop_footer_branch
      %13 = sbr.rel target = $region3
    $region8: #{a_call__.1} parent=1 // loop_exit
      _

</llo_original>
